<compile_context>
chip_gen: v7x
topology: tpu7x:2x2x1
jax: 0.10.0
libtpu: 0.0.40
codegen_flags: <defaults>
</compile_context>

<pallas_src>
import functools

import jax
import jax.numpy as jnp
from jax.experimental import pallas as pl
from jax.experimental.pallas import tpu as pltpu


def _round_up(x, m):
    return ((x + m - 1) // m) * m


def _pair_mse_kernel(s_ref, o_ref, *, list_num, inv_scale):
    """Pairwise squared-difference reduction over singular-value rows.

    s_ref: (L_pad, P_pad) f32 in VMEM.  Rows 0..list_num-1 hold the top
           `portion_num` singular values, zero-padded elsewhere, so padded
           rows/columns contribute exactly 0 to both sums below.
    o_ref: (1, 1) f32 in SMEM — the scalar latent-space loss.
    """
    s = s_ref[...]
    # Closed form: sum_{i<j} (s_i - s_j)^2 = L * sum_i s_i^2 - (sum_i s_i)^2,
    # applied per column (lane).  Sublane reductions go to the XLU slot.
    colsum = jnp.sum(s, axis=0, keepdims=True)        # (1, P_pad)
    colsumsq = jnp.sum(s * s, axis=0, keepdims=True)  # (1, P_pad)
    acc = jnp.float32(list_num) * colsumsq - colsum * colsum
    total = jnp.sum(acc)
    # inv_scale = 1 / (portion_num * num_entries), folded at trace time.
    o_ref[0, 0] = total * jnp.float32(inv_scale)


def latent_space_loss(latent_data_list, dim_num, portion_value):
    list_num = len(latent_data_list)
    portion_num = int(dim_num * portion_value)
    num_entries = int((list_num + 1) * list_num / 2)

    # TODO(synk): SVD has no clean Pallas/TPU-kernel equivalent; singular
    # values are computed with jnp.linalg.svd (glue).  The pairwise-MSE
    # reduction (the part with a clean kernel mapping) runs in Pallas.
    shapes = {tuple(x.shape) for x in latent_data_list}
    if len(shapes) == 1:
        # One batched SVD instead of L sequential launches (dominant cost).
        stacked = jnp.stack(
            [x.astype(jnp.float32) for x in latent_data_list], axis=0
        )
        s_all = jnp.linalg.svd(stacked, compute_uv=False)  # (L, min(r,c)), desc.
        s_mat = s_all[:, :portion_num]
    else:
        s_list = [
            jnp.linalg.svd(x.astype(jnp.float32), compute_uv=False)[:portion_num]
            for x in latent_data_list
        ]
        s_mat = jnp.stack(s_list, axis=0)

    l_pad = _round_up(max(list_num, 1), 8)
    p_pad = _round_up(max(portion_num, 1), 128)
    s_pad = jnp.zeros((l_pad, p_pad), jnp.float32)
    s_pad = s_pad.at[:list_num, :portion_num].set(s_mat)

    kernel = functools.partial(
        _pair_mse_kernel,
        list_num=list_num,
        inv_scale=1.0 / float(portion_num * num_entries),
    )
    out = pl.pallas_call(
        kernel,
        out_shape=jax.ShapeDtypeStruct((1, 1), jnp.float32),
        in_specs=[pl.BlockSpec(memory_space=pltpu.MemorySpace.VMEM)],
        out_specs=pl.BlockSpec(memory_space=pltpu.MemorySpace.SMEM),
    )(s_pad)
    return out[0, 0]


if __name__ == "__main__":
    import numpy as np

    key = jax.random.PRNGKey(0)
    list_num = 3
    rows, dim_num = 16, 8
    portion_value = 0.5

    keys = jax.random.split(key, list_num)
    latent_data_list = [
        jax.random.normal(k, (rows, dim_num), dtype=jnp.float32) for k in keys
    ]

    loss = latent_space_loss(latent_data_list, dim_num, portion_value)
    loss = jax.block_until_ready(loss)

    # Reference (mirrors the PyTorch forward exactly).
    portion_num = int(dim_num * portion_value)
    s_vals = [
        np.linalg.svd(np.asarray(x), compute_uv=False)[:portion_num]
        for x in latent_data_list
    ]
    arr = np.zeros(int((list_num + 1) * list_num / 2), dtype=np.float32)
    idx = 0
    for i in range(list_num - 1):
        for j in range(i + 1, list_num):
            arr[idx] = np.mean((s_vals[i] - s_vals[j]) ** 2)
            idx += 1
    ref = np.mean(arr)

    assert np.allclose(float(loss), ref, rtol=1e-4, atol=1e-5), (float(loss), ref)
    print("KERNEL_OK")
</pallas_src>

<mosaic_0001>
module attributes {stable_mosaic.version = 11 : i64} {
  func.func @_pair_mse_kernel(%arg0: memref<8x128xf32, #tpu.memory_space<vmem>>, %arg1: memref<1x1xf32, #tpu.memory_space<smem>>) attributes {dimension_semantics = [], scalar_prefetch = 0 : i64, scratch_operands = 0 : i64, tpu.core_type = #tpu.core_type<tc>} {
    %c0 = arith.constant 0 : index
    %c0_0 = arith.constant 0 : index
    %0 = vector.load %arg0[%c0, %c0_0] : memref<8x128xf32, #tpu.memory_space<vmem>>, vector<8x128xf32>
    %cst = arith.constant dense<0.000000e+00> : vector<128xf32>
    %1 = vector.multi_reduction <add>, %0, %cst [0] : vector<8x128xf32> to vector<128xf32>
    %2 = vector.shape_cast %1 : vector<128xf32> to vector<1x128xf32>
    %3 = arith.mulf %0, %0 : vector<8x128xf32>
    %cst_1 = arith.constant dense<0.000000e+00> : vector<128xf32>
    %4 = vector.multi_reduction <add>, %3, %cst_1 [0] : vector<8x128xf32> to vector<128xf32>
    %5 = vector.shape_cast %4 : vector<128xf32> to vector<1x128xf32>
    %cst_2 = arith.constant 3.000000e+00 : f32
    %6 = vector.broadcast %cst_2 : f32 to vector<1x128xf32>
    %7 = arith.mulf %6, %5 : vector<1x128xf32>
    %8 = arith.mulf %2, %2 : vector<1x128xf32>
    %9 = arith.subf %7, %8 : vector<1x128xf32>
    %10 = vector.shape_cast %9 : vector<1x128xf32> to vector<1x1x128xf32>
    %cst_3 = arith.constant dense<0.000000e+00> : vector<1xf32>
    %11 = vector.multi_reduction <add>, %10, %cst_3 [1, 2] : vector<1x1x128xf32> to vector<1xf32>
    %12 = vector.shape_cast %11 : vector<1xf32> to vector<1x1x1xf32>
    %13 = vector.extract %12[0, 0, 0] : f32 from vector<1x1x1xf32>
    %cst_4 = arith.constant 0.0416666679 : f32
    %14 = arith.mulf %13, %cst_4 : f32
    %c0_5 = arith.constant 0 : index
    %c0_6 = arith.constant 0 : index
    %15 = memref.load %arg1[%c0_5, %c0_6] : memref<1x1xf32, #tpu.memory_space<smem>>
    memref.store %14, %arg1[%c0_5, %c0_6] : memref<1x1xf32, #tpu.memory_space<smem>>
    return
  }
}

</mosaic_0001>

<llo_original>
// kernel: tpu_custom_call.1
$region0: #{tpu_custom_call.1}
  #allocation0 [shape = 'u32[]', space=smem, size = 0x4, offset = 0x4, fixed_abs, tag = 'smem constant byte address 0x4 - core index']
  #allocation1 [shape = 'u32[144,128]{1,0:T(1,128)}', space=vmem, size = 0x12000, scoped, tag = 'internal scratch']
  %s0 = inlined_call_operand.hbm [shape: f32[8,128], index: 0, kind: input, shape index: {}]
  %s1 = inlined_call_operand.hbm [shape: f32[1,1], index: 1, kind: output, shape index: {}]
  %s2 = sld [smem:[#allocation0]]
  $region18: #{tpu_custom_call.1} parent=0
    _
  %s4 = ssub.s32 1, %s2
  %s5 = scalar_select 0, %s4, %s2
  $region1: #{tpu_custom_call.1} parent=0
    #allocation2 [shape = 'u8[4096]{0}', space=vmem, size = 0x1000, scoped, tag = 'input window, operand 0, single buffered']
    #allocation3 [shape = 's32[1]{0}', space=sflag, size = 0x4, scoped, tag = 'scoped memory for tpu_custom_call.1']
    #allocation4 [shape = 's32[1]{0}', space=sflag, size = 0x4, scoped, tag = 'scoped memory for tpu_custom_call.1']
    #allocation5 [shape = 'u8[512]{0}', space=smem, size = 0x200, scoped, tag = 'output window, operand 0, single buffered']
    %6 = vsyncpa [#allocation3], 0
    %7 = vsyncpa [#allocation4], 0
    // Predicated region
    $region2: #{tpu_custom_call.1} parent=1 // pred_check
      _
    $region3: #{tpu_custom_call.1} parent=1 // pred_check_branch
      %9 = sbr.rel (0) target = $region5
    $region4: #{tpu_custom_call.1} parent=1 // pred_region
      %s11 = ssub.s32 128, 128
      %12 = vsyncadd [#allocation3], %s11
      %s14 = sshll.u32 [#allocation2], 4
      %s15 = int_to_ptr.vmem [resolvable:$true] %s14
      %17 = dma.hbm_to_vmem [thread:$0]  %s0, 128, %s15, [#allocation3]
    $region5: #{tpu_custom_call.1} parent=1 // pred_fallthru
      _
    // Predicated region
    $region6: #{tpu_custom_call.1} parent=1 // pred_check
      _
    $region7: #{tpu_custom_call.1} parent=1 // pred_check_branch
      %19 = sbr.rel (0) target = $region9
    $region8: #{tpu_custom_call.1} parent=1 // pred_region
      %20 = dma.done [#allocation3], 128
    $region9: #{tpu_custom_call.1} parent=1 // pred_fallthru
      _
    %v21 = vld [vmem:[#allocation2] sm:$0xff]
    %v22 = vrot.slane %v21, 4
    %v23 = vadd.f32 %v21, %v22
    %v24 = vrot.slane %v23, 2
    %v25 = vadd.f32 %v23, %v24
    %v26 = vrot.slane %v25, 1
    %v27 = vadd.f32 %v25, %v26
    %v28 = vmul.f32 %v21, %v21
    %v29 = vrot.slane %v28, 4
    %v30 = vadd.f32 %v28, %v29
    %v31 = vrot.slane %v30, 2
    %v32 = vadd.f32 %v30, %v31
    %v33 = vrot.slane %v32, 1
    %v34 = vadd.f32 %v32, %v33
    %v35 = vmul.f32 %v34, 3.0
    %v36 = vmul.f32 %v27, %v27
    %v37 = vsub.f32 %v35, %v36
    %vm38 = vcmask 1040384
    %v39 = vsel %vm38, %v37, 0.0
    %40 = vadd.xlane.f32.xlu0 %v39
    %v41 = vpop.xlane.xlu0 %40
    %v42 = vrot.slane %v41, 4
    %v43 = vadd.f32 %v41, %v42
    %v44 = vrot.slane %v43, 2
    %v45 = vadd.f32 %v43, %v44
    %v46 = vrot.slane %v45, 1
    %v47 = vadd.f32 %v45, %v46
    %s48 = vtos %v47
    %s49 = smul.f32 %s48, 0.041666668
    %s50 = scalar_lea.smem [#allocation5], 0
    %51 = sst [smem:[%s50]] %s49
    // Predicated region
    $region10: #{tpu_custom_call.1} parent=1 // pred_check
      _
    $region11: #{tpu_custom_call.1} parent=1 // pred_check_branch
      %53 = sbr.rel (0) target = $region13
    $region12: #{tpu_custom_call.1} parent=1 // pred_region
      %s55 = ssub.s32 16, 16
      %56 = vsyncadd [#allocation4], %s55
      %59 = dma.smem_to_hbm [#allocation5], 16, %s1, [#allocation4]
    $region13: #{tpu_custom_call.1} parent=1 // pred_fallthru
      _
    // Predicated region
    $region14: #{tpu_custom_call.1} parent=1 // pred_check
      _
    $region15: #{tpu_custom_call.1} parent=1 // pred_check_branch
      %61 = sbr.rel (0) target = $region17
    $region16: #{tpu_custom_call.1} parent=1 // pred_region
      %62 = dma.done [#allocation4], 16
    $region17: #{tpu_custom_call.1} parent=1 // pred_fallthru
      _
    %63 = sfence
    %64 = vsyncpa [#allocation3], 1
    %65 = vsyncpa [#allocation4], 1

</llo_original>
